<compile_context>
chip_gen: v7x
topology: tpu7x:2x2x1
jax: 0.10.0
libtpu: 0.0.40
codegen_flags: <defaults>
</compile_context>

<pallas_src>
import functools

import jax
import jax.numpy as jnp
from jax import lax
from jax.experimental import pallas as pl
from jax.experimental.pallas import tpu as pltpu

EPS = 1e-5                      # nn.GroupNorm default
_LANE = 128
_VMEM_LIMIT = 32 * 1024 * 1024  # safe on v5e/v6e/v7x
_TARGET_BLOCK_BYTES = 4 << 20   # ~4 MiB input blocks (hides per-step overhead on v7x)
_FAST_PATH_BYTES = 2 << 20      # whole-sample-resident threshold (padded f32 bytes)


def _cdiv(a, b):
    return (a + b - 1) // b


def _round_up(x, m):
    return ((x + m - 1) // m) * m


def _sublane_pack(itemsize):
    # sublanes per vreg tile: f32 -> 8, bf16 -> 16, int8/fp8 -> 32
    return 8 * max(1, 4 // itemsize)


def _choose_chunk(S, C, itemsize):
    """Lane-chunk size: multiple of 128, ~4 MiB blocks, balanced across S."""
    c_pad = _round_up(C, _sublane_pack(itemsize))
    ts = (_TARGET_BLOCK_BYTES // max(1, c_pad * 4)) // _LANE * _LANE
    ts = max(_LANE, ts)
    ts = min(ts, _round_up(S, _LANE))
    # Rebalance so the ragged tail is < 128*K elements instead of up to ts-1.
    k = _cdiv(S, ts)
    ts = _round_up(_cdiv(S, k), _LANE)
    k = _cdiv(S, ts)
    return ts, k


# ---------------------------------------------------------------------------
# Fast path: whole sample resident in VMEM, stats + normalize + affine fused.
# ---------------------------------------------------------------------------
def _fused_kernel(x_ref, g_ref, b_ref, o_ref, *, eps, count):
    x = x_ref[...].astype(jnp.float32)                  # (1, C, S)
    s = jnp.sum(x)
    ss = jnp.sum(x * x)
    mean = s / count
    var = jnp.maximum(ss / count - mean * mean, 0.0)    # biased var (GroupNorm)
    inv = lax.rsqrt(var + eps)
    scale = g_ref[...] * inv                            # (1, C, 1)
    shift = b_ref[...] - mean * scale
    o_ref[...] = (x * scale + shift).astype(o_ref.dtype)


# ---------------------------------------------------------------------------
# Streaming pass 1: fused per-sample sum and sum-of-squares over (C, ts) chunks.
# ---------------------------------------------------------------------------
def _stats_kernel(x_ref, stat_ref, *, ts, S, ragged):
    # x_ref: (1, C, ts) chunk; stat_ref: (1, 2, 128) resident accumulator
    k = pl.program_id(1)

    @pl.when(k == 0)
    def _():
        stat_ref[...] = jnp.zeros_like(stat_ref)

    x = x_ref[...].astype(jnp.float32)
    if ragged:
        # No XLA-side zero padding anymore: the last block is ragged and its
        # out-of-bounds lanes contain unspecified data -> mask them out.
        lane = lax.broadcasted_iota(jnp.int32, x.shape, 2) + k * ts
        x = jnp.where(lane < S, x, 0.0)
    s = jnp.sum(x)
    ss = jnp.sum(x * x)
    row = lax.broadcasted_iota(jnp.int32, (1, 2, _LANE), 1)
    stat_ref[...] += jnp.where(row == 0, s, ss)


# ---------------------------------------------------------------------------
# Streaming pass 2: y = x * scale[c] + shift[c]  (affine folded in)
# ---------------------------------------------------------------------------
def _apply_kernel(x_ref, scale_ref, shift_ref, o_ref):
    # x_ref/o_ref: (1, C, ts); scale_ref/shift_ref: (1, C, 1) float32.
    # Ragged final block: OOB output lanes are write-masked by Pallas.
    x = x_ref[...].astype(jnp.float32)
    o_ref[...] = (x * scale_ref[...] + shift_ref[...]).astype(o_ref.dtype)


def global_layer_norm(x_nchw, gamma, beta, *, eps=EPS,
                      force_streaming=False, chunk_override=None):
    """x_nchw: (N, C, H, W); gamma, beta: (C,). Returns (N, C, H, W)."""
    N, C, H, W = x_nchw.shape
    S = H * W
    x = x_nchw.reshape(N, C, S)
    itemsize = x.dtype.itemsize
    c_pad = _round_up(C, _sublane_pack(itemsize))

    g = gamma.astype(jnp.float32).reshape(1, C, 1)
    b = beta.astype(jnp.float32).reshape(1, C, 1)

    # -------- single-pass fast path: whole sample fits in VMEM --------
    sample_vmem_f32 = c_pad * _round_up(S, _LANE) * 4
    if (not force_streaming) and sample_vmem_f32 <= _FAST_PATH_BYTES:
        out = pl.pallas_call(
            functools.partial(_fused_kernel, eps=eps, count=float(C * S)),
            out_shape=jax.ShapeDtypeStruct((N, C, S), x.dtype),
            grid_spec=pltpu.PrefetchScalarGridSpec(
                num_scalar_prefetch=0,
                grid=(N,),
                in_specs=[
                    pl.BlockSpec((1, C, S), lambda n: (n, 0, 0)),
                    pl.BlockSpec((1, C, 1), lambda n: (0, 0, 0)),
                    pl.BlockSpec((1, C, 1), lambda n: (0, 0, 0)),
                ],
                out_specs=pl.BlockSpec((1, C, S), lambda n: (n, 0, 0)),
            ),
            compiler_params=pltpu.CompilerParams(
                dimension_semantics=("parallel",),
                vmem_limit_bytes=_VMEM_LIMIT,
            ),
        )(x, g, b)
        return out.reshape(N, C, H, W)

    # -------- streaming two-pass path --------
    if chunk_override is not None:
        ts = _round_up(int(chunk_override), _LANE)
        K = _cdiv(S, ts)
    else:
        ts, K = _choose_chunk(S, C, itemsize)
    ragged = (S % ts) != 0

    # pass 1: statistics
    stats = pl.pallas_call(
        functools.partial(_stats_kernel, ts=ts, S=S, ragged=ragged),
        out_shape=jax.ShapeDtypeStruct((N, 2, _LANE), jnp.float32),
        grid_spec=pltpu.PrefetchScalarGridSpec(
            num_scalar_prefetch=0,
            grid=(N, K),
            in_specs=[pl.BlockSpec((1, C, ts), lambda n, k: (n, 0, k))],
            out_specs=pl.BlockSpec((1, 2, _LANE), lambda n, k: (n, 0, 0)),
        ),
        compiler_params=pltpu.CompilerParams(
            dimension_semantics=("parallel", "arbitrary"),
            vmem_limit_bytes=_VMEM_LIMIT,
        ),
    )(x)

    # tiny XLA-side fold: stats + affine -> per-(sample, channel) scale/shift
    cnt = jnp.float32(C * S)
    sum_x = stats[:, 0, 0]                                # (N,)
    sum_x2 = stats[:, 1, 0]                               # (N,)
    mean = sum_x / cnt
    var = jnp.maximum(sum_x2 / cnt - mean * mean, 0.0)    # biased var (GroupNorm)
    inv = lax.rsqrt(var + eps)                            # (N,)
    scale = g * inv[:, None, None]                        # (N, C, 1)
    shift = b - mean[:, None, None] * scale               # (N, C, 1)

    # pass 2: normalize + affine, flattened single parallel grid axis
    out = pl.pallas_call(
        _apply_kernel,
        out_shape=jax.ShapeDtypeStruct((N, C, S), x.dtype),
        grid_spec=pltpu.PrefetchScalarGridSpec(
            num_scalar_prefetch=0,
            grid=(N * K,),
            in_specs=[
                pl.BlockSpec((1, C, ts), lambda i: (i // K, 0, i % K)),
                pl.BlockSpec((1, C, 1), lambda i: (i // K, 0, 0)),
                pl.BlockSpec((1, C, 1), lambda i: (i // K, 0, 0)),
            ],
            out_specs=pl.BlockSpec((1, C, ts), lambda i: (i // K, 0, i % K)),
        ),
        compiler_params=pltpu.CompilerParams(
            dimension_semantics=("parallel",),
            vmem_limit_bytes=_VMEM_LIMIT,
        ),
    )(x, scale, shift)
    return out.reshape(N, C, H, W)


def _reference(x_nchw, gamma, beta):
    N, C, H, W = x_nchw.shape
    xf = x_nchw.astype(jnp.float32).reshape(N, -1)
    mean = xf.mean(axis=1, keepdims=True)
    var = ((xf - mean) ** 2).mean(axis=1, keepdims=True)
    y = (xf - mean) * lax.rsqrt(var + EPS)
    y = y.reshape(N, C, H, W)
    return (y * gamma.reshape(1, C, 1, 1) + beta.reshape(1, C, 1, 1)).astype(x_nchw.dtype)


if __name__ == "__main__":
    key = jax.random.PRNGKey(0)
    kx, kg, kb, kx2 = jax.random.split(key, 4)

    N, C, H, W = 2, 4, 16, 16          # dim = C = 4
    x = jax.random.normal(kx, (N, C, H, W), dtype=jnp.float32)
    gamma = 1.0 + 0.1 * jax.random.normal(kg, (C,), dtype=jnp.float32)
    beta = 0.1 * jax.random.normal(kb, (C,), dtype=jnp.float32)

    # Case 1: small sample -> single-pass fused fast path.
    out = jax.block_until_ready(global_layer_norm(x, gamma, beta))
    ref = _reference(x, gamma, beta)
    err = float(jnp.max(jnp.abs(out.astype(jnp.float32) - ref.astype(jnp.float32))))
    assert jnp.allclose(out, ref, atol=3e-5, rtol=3e-5), f"fast path mismatch, max_err={err}"

    # Case 2: force the streaming two-pass path with a ragged, multi-chunk grid.
    H2, W2 = 20, 20                    # S = 400; chunk 128 -> K = 4, ragged tail
    x2 = jax.random.normal(kx2, (N, C, H2, W2), dtype=jnp.float32)
    out2 = jax.block_until_ready(
        global_layer_norm(x2, gamma, beta, force_streaming=True, chunk_override=128))
    ref2 = _reference(x2, gamma, beta)
    err2 = float(jnp.max(jnp.abs(out2.astype(jnp.float32) - ref2.astype(jnp.float32))))
    assert jnp.allclose(out2, ref2, atol=3e-5, rtol=3e-5), f"streaming mismatch, max_err={err2}"

    print("KERNEL_OK")
</pallas_src>

<mosaic_0001>
module attributes {stable_mosaic.version = 11 : i64} {
  func.func @_fused_kernel(%arg0: i32, %arg1: memref<1x4x256xf32, #tpu.memory_space<vmem>>, %arg2: memref<1x4x1xf32, #tpu.memory_space<vmem>>, %arg3: memref<1x4x1xf32, #tpu.memory_space<vmem>>, %arg4: memref<1x4x256xf32, #tpu.memory_space<vmem>>) attributes {dimension_semantics = [#tpu.dimension_semantics<parallel>], iteration_bounds = array<i64: 2>, scalar_prefetch = 0 : i64, scratch_operands = 0 : i64, tpu.core_type = #tpu.core_type<tc>, window_params = [{transform_indices = @transform_0, window_bounds = array<i64: 1, 4, 256>}, {pipeline_mode = #tpu.pipeline_mode<synchronous>, transform_indices = @transform_1, window_bounds = array<i64: 1, 4, 1>}, {pipeline_mode = #tpu.pipeline_mode<synchronous>, transform_indices = @transform_2, window_bounds = array<i64: 1, 4, 1>}, {transform_indices = @transform_3, window_bounds = array<i64: 1, 4, 256>}]} {
    %c0 = arith.constant 0 : index
    %c0_0 = arith.constant 0 : index
    %c0_1 = arith.constant 0 : index
    %0 = vector.load %arg1[%c0, %c0_0, %c0_1] : memref<1x4x256xf32, #tpu.memory_space<vmem>>, vector<1x4x256xf32>
    %1 = vector.shape_cast %0 : vector<1x4x256xf32> to vector<1x1x4x256xf32>
    %cst = arith.constant dense<0.000000e+00> : vector<1xf32>
    %2 = vector.multi_reduction <add>, %1, %cst [1, 2, 3] : vector<1x1x4x256xf32> to vector<1xf32>
    %3 = vector.shape_cast %2 : vector<1xf32> to vector<1x1x1x1xf32>
    %4 = vector.extract %3[0, 0, 0, 0] : f32 from vector<1x1x1x1xf32>
    %5 = arith.mulf %0, %0 : vector<1x4x256xf32>
    %6 = vector.shape_cast %5 : vector<1x4x256xf32> to vector<1x1x4x256xf32>
    %cst_2 = arith.constant dense<0.000000e+00> : vector<1xf32>
    %7 = vector.multi_reduction <add>, %6, %cst_2 [1, 2, 3] : vector<1x1x4x256xf32> to vector<1xf32>
    %8 = vector.shape_cast %7 : vector<1xf32> to vector<1x1x1x1xf32>
    %9 = vector.extract %8[0, 0, 0, 0] : f32 from vector<1x1x1x1xf32>
    %cst_3 = arith.constant 1.024000e+03 : f32
    %10 = arith.divf %4, %cst_3 : f32
    %cst_4 = arith.constant 1.024000e+03 : f32
    %11 = arith.divf %9, %cst_4 : f32
    %12 = arith.mulf %10, %10 : f32
    %13 = arith.subf %11, %12 : f32
    %cst_5 = arith.constant 0.000000e+00 : f32
    %14 = arith.maximumf %13, %cst_5 : f32
    %cst_6 = arith.constant 9.99999974E-6 : f32
    %15 = arith.addf %14, %cst_6 : f32
    %16 = math.rsqrt %15 : f32
    %c0_7 = arith.constant 0 : index
    %c0_8 = arith.constant 0 : index
    %c0_9 = arith.constant 0 : index
    %17 = vector.load %arg2[%c0_7, %c0_8, %c0_9] : memref<1x4x1xf32, #tpu.memory_space<vmem>>, vector<1x4x1xf32>
    %18 = vector.broadcast %16 : f32 to vector<1x4x1xf32>
    %19 = arith.mulf %17, %18 : vector<1x4x1xf32>
    %c0_10 = arith.constant 0 : index
    %c0_11 = arith.constant 0 : index
    %c0_12 = arith.constant 0 : index
    %20 = vector.load %arg3[%c0_10, %c0_11, %c0_12] : memref<1x4x1xf32, #tpu.memory_space<vmem>>, vector<1x4x1xf32>
    %21 = vector.broadcast %10 : f32 to vector<1x4x1xf32>
    %22 = arith.mulf %21, %19 : vector<1x4x1xf32>
    %23 = arith.subf %20, %22 : vector<1x4x1xf32>
    %24 = vector.broadcast %19 : vector<1x4x1xf32> to vector<1x4x256xf32>
    %25 = arith.mulf %0, %24 : vector<1x4x256xf32>
    %26 = vector.broadcast %23 : vector<1x4x1xf32> to vector<1x4x256xf32>
    %27 = arith.addf %25, %26 : vector<1x4x256xf32>
    %c0_13 = arith.constant 0 : index
    %c0_14 = arith.constant 0 : index
    %c0_15 = arith.constant 0 : index
    %28 = vector.load %arg4[%c0_13, %c0_14, %c0_15] : memref<1x4x256xf32, #tpu.memory_space<vmem>>, vector<1x4x256xf32>
    tpu.vector_store %arg4[%c0_13, %c0_14, %c0_15], %27 {strides = array<i32>} : memref<1x4x256xf32, #tpu.memory_space<vmem>>, vector<1x4x256xf32>,
    return
  }
  func.func @transform_0(%arg0: i32) -> (i32, i32, i32) {
    %c0_i32 = arith.constant 0 : i32
    %c0_i32_0 = arith.constant 0 : i32
    %c0_i32_1 = arith.constant 0 : i32
    return %arg0, %c0_i32, %c0_i32_0 : i32, i32, i32
  }
  func.func @transform_1(%arg0: i32) -> (i32, i32, i32) {
    %c0_i32 = arith.constant 0 : i32
    %c0_i32_0 = arith.constant 0 : i32
    %c0_i32_1 = arith.constant 0 : i32
    %c0_i32_2 = arith.constant 0 : i32
    return %c0_i32, %c0_i32_0, %c0_i32_1 : i32, i32, i32
  }
  func.func @transform_2(%arg0: i32) -> (i32, i32, i32) {
    %c0_i32 = arith.constant 0 : i32
    %c0_i32_0 = arith.constant 0 : i32
    %c0_i32_1 = arith.constant 0 : i32
    %c0_i32_2 = arith.constant 0 : i32
    return %c0_i32, %c0_i32_0, %c0_i32_1 : i32, i32, i32
  }
  func.func @transform_3(%arg0: i32) -> (i32, i32, i32) {
    %c0_i32 = arith.constant 0 : i32
    %c0_i32_0 = arith.constant 0 : i32
    %c0_i32_1 = arith.constant 0 : i32
    return %arg0, %c0_i32, %c0_i32_0 : i32, i32, i32
  }
}

</mosaic_0001>

<llo_original>
// kernel: tpu_custom_call.1
$region0: #{tpu_custom_call.1}
  #allocation0 [shape = 'u32[]', space=smem, size = 0x4, offset = 0x4, fixed_abs, tag = 'smem constant byte address 0x4 - core index']
  #allocation1 [shape = 'u32[144,128]{1,0:T(1,128)}', space=vmem, size = 0x12000, scoped, tag = 'internal scratch']
  %s0 = inlined_call_operand.hbm [shape: f32[2,4,256], index: 0, kind: input, shape index: {}]
  %s1 = inlined_call_operand.vmem [shape: f32[1,4,1], index: 1, kind: input, shape index: {}]
  %s2 = inlined_call_operand.vmem [shape: f32[1,4,1], index: 2, kind: input, shape index: {}]
  %s3 = inlined_call_operand.hbm [shape: f32[2,4,256], index: 3, kind: output, shape index: {}]
  %s4 = sld [smem:[#allocation0]]
  $region49: #{tpu_custom_call.1} parent=0
    _
  %s6 = ssub.s32 1, %s4
  %s7 = scalar_select 0, %s6, %s4
  $region1: #{tpu_custom_call.1} parent=0
    #allocation2 [shape = 'u8[8192]{0}', space=vmem, size = 0x2000, scoped, tag = 'input window, operand 0']
    #allocation3 [shape = 's32[2]{0}', space=sflag, size = 0x8, scoped, tag = 'scoped memory for tpu_custom_call.1']
    #allocation4 [shape = 's32[2]{0}', space=sflag, size = 0x8, scoped, tag = 'scoped memory for tpu_custom_call.1']
    #allocation5 [shape = 'u8[8192]{0}', space=vmem, size = 0x2000, scoped, tag = 'output window, operand 0']
    %8 = vsyncpa [#allocation3], 0
    %s9 = scalar_lea.sflag [#allocation3], 1
    %10 = vsyncpa %s9, 0
    %11 = vsyncpa [#allocation4], 0
    %s12 = scalar_lea.sflag [#allocation4], 1
    %13 = vsyncpa %s12, 0
    loop: start=0, step=1, limit=4
    $region2: #{tpu_custom_call.1} parent=1 // loop_pre_header
      _
    $region3: #{tpu_custom_call.1} parent=1 // loop_header
      %s15 = sphi 0, %s19
      %p16 = scmp.ge.s32.totalorder %s15, 4
      %s25 = sphi 0, %s27
      %s28 = sphi 0, %s25
      %s29 = sphi 0, %s28
      %s45 = sphi 0, %s29
      %s49 = sphi 0, %s49
      %s51 = sphi 0, %s49
      %s52 = sphi 0, %s51
      %s66 = sphi 0, %s52
      %s70 = sphi 0, %s70
      %s72 = sphi 0, %s70
      %s73 = sphi 0, %s72
      %s87 = sphi 0, %s73
      %s93 = sphi 0, %s95
      %s96 = sphi 0, %s93
      %s97 = sphi 0, %s96
      %s113 = sphi 0, %s97
    $region4: #{tpu_custom_call.1} parent=1 // loop_header_branch
      %18 = sbr.rel (%p16) target = $region8
    $region5: #{tpu_custom_call.1} parent=1 // loop_body
      %s20 = ssub.s32 %s15, 1
      %s21 = ssub.s32 %s15, 2
      %s22 = sadd.s32 %s15, 1
      %s23 = ssub.s32 %s15, %s22
      %p24 = scmp.eq.s32.totalorder %s23, 0
      %s26 = sadd.s32 %s25, 1
      %s27 = scalar_select %p24, %s25, %s26
      %p30 = pneg %p24
      %p31 = scmp.eq.s32.totalorder %s15, 1
      %p32 = por %p30, %p31
      %p33 = scmp.ne.s32.totalorder %s25, %s28
      %p34 = scmp.eq.s32.totalorder %s15, 0
      %p35 = por %p33, %p34
      %p36 = scmp.ne.s32.totalorder %s25, %s28
      %p37 = scmp.eq.s32.totalorder %s20, 1
      %p38 = por %p36, %p37
      %p39 = scmp.ne.s32.totalorder %s28, %s29
      %p40 = scmp.eq.s32.totalorder %s20, 0
      %p41 = por %p39, %p40
      %p42 = scmp.ne.s32.totalorder %s28, %s29
      %p43 = scmp.eq.s32.totalorder %s21, 1
      %p44 = por %p42, %p43
      %p46 = scmp.ne.s32.totalorder %s29, %s45
      %p47 = scmp.eq.s32.totalorder %s21, 0
      %p48 = por %p46, %p47
      %s50 = sadd.s32 %s49, 1
      %p53 = scmp.eq.s32.totalorder %s15, 1
      %p54 = scmp.ne.s32.totalorder %s49, %s51
      %p55 = scmp.eq.s32.totalorder %s15, 0
      %p56 = por %p54, %p55
      %p57 = scmp.ne.s32.totalorder %s49, %s51
      %p58 = scmp.eq.s32.totalorder %s20, 1
      %p59 = por %p57, %p58
      %p60 = scmp.ne.s32.totalorder %s51, %s52
      %p61 = scmp.eq.s32.totalorder %s20, 0
      %p62 = por %p60, %p61
      %p63 = scmp.ne.s32.totalorder %s51, %s52
      %p64 = scmp.eq.s32.totalorder %s21, 1
      %p65 = por %p63, %p64
      %p67 = scmp.ne.s32.totalorder %s52, %s66
      %p68 = scmp.eq.s32.totalorder %s21, 0
      %p69 = por %p67, %p68
      %s71 = sadd.s32 %s70, 1
      %p74 = scmp.eq.s32.totalorder %s15, 1
      %p75 = scmp.ne.s32.totalorder %s70, %s72
      %p76 = scmp.eq.s32.totalorder %s15, 0
      %p77 = por %p75, %p76
      %p78 = scmp.ne.s32.totalorder %s70, %s72
      %p79 = scmp.eq.s32.totalorder %s20, 1
      %p80 = por %p78, %p79
      %p81 = scmp.ne.s32.totalorder %s72, %s73
      %p82 = scmp.eq.s32.totalorder %s20, 0
      %p83 = por %p81, %p82
      %p84 = scmp.ne.s32.totalorder %s72, %s73
      %p85 = scmp.eq.s32.totalorder %s21, 1
      %p86 = por %p84, %p85
      %p88 = scmp.ne.s32.totalorder %s73, %s87
      %p89 = scmp.eq.s32.totalorder %s21, 0
      %p90 = por %p88, %p89
      %s91 = ssub.s32 %s15, %s22
      %p92 = scmp.eq.s32.totalorder %s91, 0
      %s94 = sadd.s32 %s93, 1
      %s95 = scalar_select %p92, %s93, %s94
      %p98 = pneg %p92
      %p99 = scmp.eq.s32.totalorder %s15, 1
      %p100 = por %p98, %p99
      %p101 = scmp.ne.s32.totalorder %s93, %s96
      %p102 = scmp.eq.s32.totalorder %s15, 0
      %p103 = por %p101, %p102
      %p104 = scmp.ne.s32.totalorder %s93, %s96
      %p105 = scmp.eq.s32.totalorder %s20, 1
      %p106 = por %p104, %p105
      %p107 = scmp.ne.s32.totalorder %s96, %s97
      %p108 = scmp.eq.s32.totalorder %s20, 0
      %p109 = por %p107, %p108
      %p110 = scmp.ne.s32.totalorder %s96, %s97
      %p111 = scmp.eq.s32.totalorder %s21, 1
      %p112 = por %p110, %p111
      %p114 = scmp.ne.s32.totalorder %s97, %s113
      %p115 = scmp.eq.s32.totalorder %s21, 0
      %p116 = por %p114, %p115
      %p117 = scmp.le.s32.totalorder 1, %s15
      %p118 = scmp.lt.s32.totalorder %s15, 3
      %p119 = pnand %p117, %p118
      %p120 = pneg %p119
      // Predicated region
      $region9: #{tpu_custom_call.1} parent=5 // pred_check
        _
      $region10: #{tpu_custom_call.1} parent=5 // pred_check_branch
        %122 = sbr.rel (%p119) target = $region12
      $region11: #{tpu_custom_call.1} parent=5 // pred_region
        %s123 = ssub.s32 %s15, 1
        // Predicated region
        $region13: #{tpu_custom_call.1} parent=11 // pred_check
          %p124 = pneg %p62
        $region14: #{tpu_custom_call.1} parent=11 // pred_check_branch
          %126 = sbr.rel (%p124) target = $region16
        $region15: #{tpu_custom_call.1} parent=11 // pred_region
          _
        $region16: #{tpu_custom_call.1} parent=11 // pred_fallthru
          _
        // Predicated region
        $region17: #{tpu_custom_call.1} parent=11 // pred_check
          %p127 = pneg %p83
        $region18: #{tpu_custom_call.1} parent=11 // pred_check_branch
          %129 = sbr.rel (%p127) target = $region20
        $region19: #{tpu_custom_call.1} parent=11 // pred_region
          _
        $region20: #{tpu_custom_call.1} parent=11 // pred_fallthru
          _
      $region12: #{tpu_custom_call.1} parent=5 // pred_fallthru
        _
      %p130 = scmp.lt.s32.totalorder %s15, 2
      // Predicated region
      $region21: #{tpu_custom_call.1} parent=5 // pred_check
        %p131 = pneg %p130
      $region22: #{tpu_custom_call.1} parent=5 // pred_check_branch
        %133 = sbr.rel (%p131) target = $region24
      $region23: #{tpu_custom_call.1} parent=5 // pred_region
        // Predicated region
        $region25: #{tpu_custom_call.1} parent=23 // pred_check
          %p134 = pneg %p35
        $region26: #{tpu_custom_call.1} parent=23 // pred_check_branch
          %136 = sbr.rel (%p134) target = $region28
        $region27: #{tpu_custom_call.1} parent=23 // pred_region
          %s137 = sand.u32 %s25, 1
          %s138 = scalar_lea.sflag [#allocation3], %s137
          %s139 = sand.u32 %s25, 1
          %s140 = smul.addr %s139, 8
          %s141 = scalar_lea.vmem [#allocation2], %s140
          %s143 = ssub.s32 128, 128
          %144 = vsyncadd %s138, %s143
          %s145 = smul.addr %s15, 2
          %s146 = smul.addr %s145, 64
          %s147 = scalar_lea.hbm %s0, %s146
          %s149 = sshll.u32 %s141, 4
          %s150 = int_to_ptr.vmem [resolvable:$true] %s149
          %152 = dma.hbm_to_vmem [thread:$0]  %s147, 128, %s150, %s138
        $region28: #{tpu_custom_call.1} parent=23 // pred_fallthru
          _
      $region24: #{tpu_custom_call.1} parent=5 // pred_fallthru
        _
      %p153 = scmp.le.s32.totalorder 1, %s15
      %p154 = scmp.lt.s32.totalorder %s15, 3
      %p155 = pnand %p153, %p154
      %p156 = pneg %p155
      // Predicated region
      $region29: #{tpu_custom_call.1} parent=5 // pred_check
        _
      $region30: #{tpu_custom_call.1} parent=5 // pred_check_branch
        %158 = sbr.rel (%p155) target = $region32
      $region31: #{tpu_custom_call.1} parent=5 // pred_region
        %s159 = ssub.s32 %s15, 1
        %s160 = sand.u32 %s28, 1
        %s161 = scalar_lea.sflag [#allocation3], %s160
        %s162 = sand.u32 %s28, 1
        %s163 = smul.addr %s162, 8
        %s164 = scalar_lea.vmem [#allocation2], %s163
        // Predicated region
        $region33: #{tpu_custom_call.1} parent=31 // pred_check
          %p165 = pneg %p41
        $region34: #{tpu_custom_call.1} parent=31 // pred_check_branch
          %167 = sbr.rel (%p165) target = $region36
        $region35: #{tpu_custom_call.1} parent=31 // pred_region
          %168 = dma.done %s161, 128
        $region36: #{tpu_custom_call.1} parent=31 // pred_fallthru
          _
        %s169 = sand.u32 %s28, 1
        %s170 = scalar_lea.sflag [#allocation3], %s169
        %s171 = sand.u32 %s28, 1
        %s172 = smul.addr %s171, 8
        %s173 = scalar_lea.vmem [#allocation2], %s172
        %p174 = pneg %p41
        %p175 = pneg %p38
        %p176 = pneg %p62
        %p177 = pneg %p59
        %p178 = pneg %p83
        %p179 = pneg %p80
        %p180 = pneg %p109
        %p181 = pneg %p106
        %s182 = sand.u32 %s96, 1
        %s183 = scalar_lea.sflag [#allocation4], %s182
        %s184 = sand.u32 %s96, 1
        %s185 = smul.addr %s184, 8
        %s186 = scalar_lea.vmem [#allocation5], %s185
        %v187 = vld [vmem:[%s164] sm:$0xff]
        %v189 = vcombine.high %v187, %v187
        %vm191 = vcmask 1043456
        %v192 = vsel %vm191, %v187, 0.0
        %v193 = vsel %vm191, %v189, 0.0
        %v194 = vadd.f32 %v192, %v193
        %195 = vadd.xlane.f32.xlu0 %v194
        %v196 = vpop.xlane.xlu0 %195
        %v197 = vrot.slane %v196, 4
        %v198 = vadd.f32 %v196, %v197
        %v199 = vrot.slane %v198, 2
        %v200 = vadd.f32 %v198, %v199
        %v201 = vrot.slane %v200, 1
        %v202 = vadd.f32 %v200, %v201
        %s203 = vtos %v202
        %v204 = vmul.f32 %v187, %v187
        %v206 = vcombine.high %v204, %v204
        %v208 = vsel %vm191, %v204, 0.0
        %v209 = vsel %vm191, %v206, 0.0
        %v210 = vadd.f32 %v208, %v209
        %211 = vadd.xlane.f32.xlu0 %v210
        %v212 = vpop.xlane.xlu0 %211
        %v213 = vrot.slane %v212, 4
        %v214 = vadd.f32 %v212, %v213
        %v215 = vrot.slane %v214, 2
        %v216 = vadd.f32 %v214, %v215
        %v217 = vrot.slane %v216, 1
        %v218 = vadd.f32 %v216, %v217
        %s219 = vtos %v218
        %v220 = vrcp.pop 1024.0
        %s221 = vtos %v220
        %s222 = smul.f32 %s203, %s221
        %v223 = vrcp.pop 1024.0
        %s224 = vtos %v223
        %s225 = smul.f32 %s219, %s224
        %s226 = smul.f32 %s222, %s222
        %s227 = ssub.f32 %s225, %s226
        %s228 = smax.f32 %s227, 0.0
        %s229 = sadd.f32 %s228, 1e-05
        %v230 = vstv %s229
        %v231 = vrsqrt.pop %v230
        %s232 = vtos %v231
        %v233 = vld [vmem:[%s1] sm:$0xf]
        %v234 = vstv %s232
        %v235 = vmul.f32 %v233, %v234
        %v236 = vld [vmem:[%s2] sm:$0xf]
        %v237 = vstv %s222
        %v238 = vmul.f32 %v237, %v235
        %v239 = vsub.f32 %v236, %v238
        %241 = vset.pattern.permute.xlu0 0
        %242 = vperm.xlu0 %241, %v235
        %v243 = vpop.permute.xlu0 %242
        %v245 = vunpack.c.l.s4 839922192
        %v246 = vunpack.c.0.s8 %v245
        %v247 = vlaneseq
        %v248 = vshrl.u32 %v247, 7
        %v249 = vsub.s32 %v246, %v248
        %v250 = vrot.slane %v243, %v249
        %v252 = vmul.f32 %v187, %v250
        %254 = vset.pattern.permute.xlu0 0
        %255 = vperm.xlu0 %254, %v239
        %v256 = vpop.permute.xlu0 %255
        %v258 = vunpack.c.l.s4 839922192
        %v259 = vunpack.c.0.s8 %v258
        %v260 = vlaneseq
        %v261 = vshrl.u32 %v260, 7
        %v262 = vsub.s32 %v259, %v261
        %v263 = vrot.slane %v256, %v262
        %v265 = vadd.f32 %v252, %v263
        %266 = vst [vmem:[%s186] sm:$0xff] %v265
        %s267 = sand.u32 %s96, 1
        %s268 = scalar_lea.sflag [#allocation4], %s267
        %s269 = sand.u32 %s96, 1
        %s270 = smul.addr %s269, 8
        %s271 = scalar_lea.vmem [#allocation5], %s270
        // Predicated region
        $region37: #{tpu_custom_call.1} parent=31 // pred_check
          %p272 = pneg %p106
        $region38: #{tpu_custom_call.1} parent=31 // pred_check_branch
          %274 = sbr.rel (%p272) target = $region40
        $region39: #{tpu_custom_call.1} parent=31 // pred_region
          %s276 = ssub.s32 128, 128
          %277 = vsyncadd %s268, %s276
          %s278 = smul.addr %s20, 2
          %s279 = smul.addr %s278, 64
          %s280 = scalar_lea.hbm %s3, %s279
          %s282 = sshll.u32 %s271, 4
          %s283 = int_to_ptr.vmem [resolvable:$true] %s282
          %285 = dma.vmem_to_hbm [thread:$0]  %s283, 128, %s280, %s268
        $region40: #{tpu_custom_call.1} parent=31 // pred_fallthru
          _
      $region32: #{tpu_custom_call.1} parent=5 // pred_fallthru
        _
      %p286 = scmp.le.s32.totalorder 2, %s15
      // Predicated region
      $region41: #{tpu_custom_call.1} parent=5 // pred_check
        %p287 = pneg %p286
      $region42: #{tpu_custom_call.1} parent=5 // pred_check_branch
        %289 = sbr.rel (%p287) target = $region44
      $region43: #{tpu_custom_call.1} parent=5 // pred_region
        %s290 = ssub.s32 %s15, 2
        // Predicated region
        $region45: #{tpu_custom_call.1} parent=43 // pred_check
          %p291 = pneg %p112
        $region46: #{tpu_custom_call.1} parent=43 // pred_check_branch
          %293 = sbr.rel (%p291) target = $region48
        $region47: #{tpu_custom_call.1} parent=43 // pred_region
          %s294 = sand.u32 %s97, 1
          %s295 = scalar_lea.sflag [#allocation4], %s294
          %s296 = sand.u32 %s97, 1
          %s297 = smul.addr %s296, 8
          %s298 = scalar_lea.vmem [#allocation5], %s297
          %299 = dma.done %s295, 128
        $region48: #{tpu_custom_call.1} parent=43 // pred_fallthru
          _
      $region44: #{tpu_custom_call.1} parent=5 // pred_fallthru
        _
    $region6: #{tpu_custom_call.1} parent=1 // loop_footer
      %s19 = sadd.s32 1, %s15
    $region7: #{tpu_custom_call.1} parent=1 // loop_footer_branch
      %14 = sbr.rel target = $region3
    $region8: #{tpu_custom_call.1} parent=1 // loop_exit
      _
    %300 = vsyncpa [#allocation3], 1
    %s301 = scalar_lea.sflag [#allocation3], 1
    %302 = vsyncpa %s301, 1
    %303 = vsyncpa [#allocation4], 1
    %s304 = scalar_lea.sflag [#allocation4], 1
    %305 = vsyncpa %s304, 1

</llo_original>
